<compile_context>
chip_gen: v6e
topology: v6e:2x2x1
jax: 0.10.0
libtpu: 0.0.40
codegen_flags: <defaults>
</compile_context>

<pallas_src>
import jax
import jax.numpy as jnp
from jax.experimental import pallas as pl
from jax.experimental.pallas import tpu as pltpu

LANE = 128  # TPU lane width


# ----------------------------- Pallas kernel ------------------------------ #
def _fused_gather_matmul_kernel(ids_ref, table_ref, w_ref, out_ref, emb_buf, sem):
    """One grid step: DMA-gather TILE_N table rows by id, then (TILE_N,D)@(D,O_pad)."""
    tile_n = emb_buf.shape[0]
    base = pl.program_id(0) * tile_n

    # Issue one row-gather DMA per node id (HBM table row -> VMEM slab row).
    @pl.loop(0, tile_n)
    def _start(r):
        nid = ids_ref[base + r]
        pltpu.make_async_copy(table_ref.at[nid], emb_buf.at[r], sem).start()

    # Wait for all of them (equal-sized copies sharing one DMA semaphore).
    @pl.loop(0, tile_n)
    def _wait(r):
        nid = ids_ref[base + r]
        pltpu.make_async_copy(table_ref.at[nid], emb_buf.at[r], sem).wait()

    # Lane-dense MXU matmul: (TILE_N, D) @ (D, O_pad) -> (TILE_N, O_pad).
    out_ref[...] = jnp.dot(
        emb_buf[...], w_ref[...], preferred_element_type=jnp.float32
    ).astype(out_ref.dtype)


def disease_classifier_scores(node_ids, table, weight, *, tile_n=128):
    """Fused gather + classify. Returns (weight @ table[node_ids].T).T == scores.T.

    node_ids : (N,)   int32   indices into the embedding table
    table    : (T, D) float32 encoder embedding table
    weight   : (O, D) float32 classifier weight
    returns  : (N, O) float32
    """
    n = node_ids.shape[0]
    _, d = table.shape
    o = weight.shape[0]

    o_pad = pl.cdiv(o, LANE) * LANE          # lane-dense output tiles
    n_pad = pl.cdiv(n, tile_n) * tile_n      # whole number of node tiles

    ids = node_ids.astype(jnp.int32)
    if n_pad != n:                           # pad ids (extra rows sliced off below)
        ids = jnp.concatenate([ids, jnp.zeros((n_pad - n,), jnp.int32)])

    # Tiny one-time glue: weight.T zero-padded to (D, O_pad); resident in VMEM.
    w_pad = jnp.zeros((d, o_pad), jnp.float32).at[:, :o].set(
        weight.T.astype(jnp.float32)
    )

    cost = pl.CostEstimate(
        flops=2 * n_pad * d * o_pad,
        transcendentals=0,
        bytes_accessed=n_pad * d * 4 + d * o_pad * 4 + n_pad * o_pad * 4,
    )

    out = pl.pallas_call(
        _fused_gather_matmul_kernel,
        out_shape=jax.ShapeDtypeStruct((n_pad, o_pad), jnp.float32),
        grid_spec=pltpu.PrefetchScalarGridSpec(
            num_scalar_prefetch=1,                     # node ids -> SMEM
            grid=(n_pad // tile_n,),
            in_specs=[
                pl.BlockSpec(memory_space=pl.ANY),                 # table stays in HBM
                pl.BlockSpec((d, o_pad), lambda i, ids: (0, 0)),   # weight, resident
            ],
            out_specs=pl.BlockSpec((tile_n, o_pad), lambda i, ids: (i, 0)),
            scratch_shapes=[
                pltpu.VMEM((tile_n, d), jnp.float32),              # gathered slab
                pltpu.SemaphoreType.DMA(()),
            ],
        ),
        compiler_params=pltpu.CompilerParams(
            dimension_semantics=("parallel",),         # shard node tiles across TCs
        ),
        cost_estimate=cost,
    )(ids, table, w_pad)

    return out[:n, :o]


# --------------------------- Synthetic "encoder" --------------------------- #
class SimpleEmbeddingEncoder:
    """Deterministic stand-in encoder: an embedding-table lookup.

    The reference (un-fused) path returns (embed_dim, num_nodes) to match the
    graph-encoder convention; the fused kernel reads self.table directly.
    """

    def __init__(self, num_nodes_total, embed_dim, key):
        self.embed_dim = embed_dim
        self.table = jax.random.normal(
            key, (num_nodes_total, embed_dim), dtype=jnp.float32
        )

    def __call__(self, node_ids):      # reference path only
        return self.table[node_ids].T  # (D, N)


class DiseaseClassifierJAX:
    def __init__(self, output_size, encoder, key):
        self.encoder = encoder
        embed_dim = encoder.embed_dim
        k_w, k_c, k_l = jax.random.split(key, 3)
        # nn.Parameter(torch.randn(output_size, embed_dim))
        self.weight = jax.random.normal(
            k_w, (output_size, embed_dim), dtype=jnp.float32
        )
        # xavier_uniform_ classifier_weights (unused by forward, kept for parity)
        bound = jnp.sqrt(6.0 / (output_size + embed_dim))
        self.classifier_weights = jax.random.uniform(
            k_c, (output_size, embed_dim), minval=-bound, maxval=bound,
            dtype=jnp.float32,
        )
        # nn.Linear(embed_dim, 1) params (forward_hinge path, not exercised by forward())
        lb = 1.0 / jnp.sqrt(embed_dim)
        self.linear_w = jax.random.uniform(
            k_l, (1, embed_dim), minval=-lb, maxval=lb, dtype=jnp.float32
        )
        self.linear_b = jnp.zeros((1,), jnp.float32)
        # TODO(synk): BCEWithLogitsLoss / compute_loss / forward_hinge / hinge_loss
        # are training-only paths and are not kernelized.

    def forward(self, node_ids):
        # Fused Pallas kernel: gather(node_ids) + weight @ emb, returned as scores.T.
        return disease_classifier_scores(node_ids, self.encoder.table, self.weight)


# ---------------------------------- main ----------------------------------- #
if __name__ == "__main__":
    key = jax.random.PRNGKey(0)
    k_enc, k_cls, k_ids = jax.random.split(key, 3)

    num_nodes_total = 512   # embedding-table rows
    embed_dim = 32          # D
    output_size = 8         # number of diseases (O)
    batch = 200             # node_ids per forward call (exercises tile padding)

    encoder = SimpleEmbeddingEncoder(num_nodes_total, embed_dim, k_enc)
    model = DiseaseClassifierJAX(output_size, encoder, k_cls)

    node_ids = jax.random.randint(k_ids, (batch,), 0, num_nodes_total)

    scores_t = jax.block_until_ready(model.forward(node_ids))  # (batch, output_size)

    # Reference check against plain JAX: (weight @ encoder(node_ids)).T
    ref = (model.weight @ encoder(node_ids)).T
    assert scores_t.shape == (batch, output_size)
    assert jnp.allclose(scores_t, ref, atol=1e-3, rtol=1e-3), float(
        jnp.max(jnp.abs(scores_t - ref))
    )

    print("KERNEL_OK")
</pallas_src>

<mosaic_0001>
module attributes {stable_mosaic.version = 11 : i64} {
  func.func @_fused_gather_matmul_kernel(%arg0: i32, %arg1: memref<256xi32, #tpu.memory_space<smem>>, %arg2: memref<512x32xf32, #tpu.memory_space<any>>, %arg3: memref<32x128xf32, #tpu.memory_space<vmem>>, %arg4: memref<128x128xf32, #tpu.memory_space<vmem>>, %arg5: memref<128x32xf32, #tpu.memory_space<vmem>>, %arg6: memref<!tpu.dma_semaphore, #tpu.memory_space<semaphore_mem>>) attributes {dimension_semantics = [#tpu.dimension_semantics<parallel>], iteration_bounds = array<i64: 2>, scalar_prefetch = 1 : i64, scratch_operands = 2 : i64, tpu.core_type = #tpu.core_type<tc>, window_params = [{}, {pipeline_mode = #tpu.pipeline_mode<synchronous>, transform_indices = @transform_1, window_bounds = array<i64: 32, 128>}, {transform_indices = @transform_2, window_bounds = array<i64: 128, 128>}]} {
    %c128_i32 = arith.constant 128 : i32
    %0 = arith.muli %arg0, %c128_i32 : i32
    %c0_i32 = arith.constant 0 : i32
    %c128_i32_0 = arith.constant 128 : i32
    %1 = arith.addi %c0_i32, %c128_i32_0 : i32
    %c1_i32 = arith.constant 1 : i32
    scf.for %arg7 = %c0_i32 to %1 step %c1_i32  : i32 {
      %c1_i32_11 = arith.constant 1 : i32
      %7 = arith.muli %arg7, %c1_i32_11 : i32
      %c0_i32_12 = arith.constant 0 : i32
      %8 = arith.addi %c0_i32_12, %7 : i32
      %9 = arith.addi %0, %8 : i32
      %10 = arith.index_cast %9 : i32 to index
      %11 = memref.load %arg1[%10] : memref<256xi32, #tpu.memory_space<smem>>
      %c0_i32_13 = arith.constant 0 : i32
      %12 = tpu.memref_slice %arg2[%11, %c0_i32_13] : memref<512x32xf32, #tpu.memory_space<any>> -> memref<1x32xf32, #tpu.memory_space<any>>
      %13 = tpu.memref_squeeze %12 : memref<1x32xf32, #tpu.memory_space<any>> -> memref<32xf32, #tpu.memory_space<any>>
      %c0_i32_14 = arith.constant 0 : i32
      %14 = tpu.memref_slice %arg5[%8, %c0_i32_14] : memref<128x32xf32, #tpu.memory_space<vmem>> -> memref<1x32xf32, #tpu.memory_space<vmem>>
      %15 = tpu.memref_squeeze %14 : memref<1x32xf32, #tpu.memory_space<vmem>> -> memref<32xf32, #tpu.memory_space<vmem>>
      tpu.enqueue_dma source(%13 : memref<32xf32, #tpu.memory_space<any>>) target(%15 : memref<32xf32, #tpu.memory_space<vmem>>) target_semaphore(%arg6 : memref<!tpu.dma_semaphore, #tpu.memory_space<semaphore_mem>>)
    }
    %c128_i32_1 = arith.constant 128 : i32
    %c0_i32_2 = arith.constant 0 : i32
    %c128_i32_3 = arith.constant 128 : i32
    %2 = arith.addi %c0_i32_2, %c128_i32_3 : i32
    %c1_i32_4 = arith.constant 1 : i32
    scf.for %arg7 = %c0_i32_2 to %2 step %c1_i32_4  : i32 {
      %c1_i32_11 = arith.constant 1 : i32
      %7 = arith.muli %arg7, %c1_i32_11 : i32
      %c0_i32_12 = arith.constant 0 : i32
      %8 = arith.addi %c0_i32_12, %7 : i32
      %9 = arith.addi %0, %8 : i32
      %10 = arith.index_cast %9 : i32 to index
      %11 = memref.load %arg1[%10] : memref<256xi32, #tpu.memory_space<smem>>
      %c0_i32_13 = arith.constant 0 : i32
      %12 = tpu.memref_slice %arg2[%11, %c0_i32_13] : memref<512x32xf32, #tpu.memory_space<any>> -> memref<1x32xf32, #tpu.memory_space<any>>
      %13 = tpu.memref_squeeze %12 : memref<1x32xf32, #tpu.memory_space<any>> -> memref<32xf32, #tpu.memory_space<any>>
      %c0_i32_14 = arith.constant 0 : i32
      %14 = tpu.memref_slice %arg5[%8, %c0_i32_14] : memref<128x32xf32, #tpu.memory_space<vmem>> -> memref<1x32xf32, #tpu.memory_space<vmem>>
      %15 = tpu.memref_squeeze %14 : memref<1x32xf32, #tpu.memory_space<vmem>> -> memref<32xf32, #tpu.memory_space<vmem>>
      tpu.wait_dma2 semaphore(%arg6 : memref<!tpu.dma_semaphore, #tpu.memory_space<semaphore_mem>>) src(%13 : memref<32xf32, #tpu.memory_space<any>>) dst(%15 : memref<32xf32, #tpu.memory_space<vmem>>)
    }
    %c128_i32_5 = arith.constant 128 : i32
    %c0 = arith.constant 0 : index
    %c0_6 = arith.constant 0 : index
    %3 = vector.load %arg5[%c0, %c0_6] : memref<128x32xf32, #tpu.memory_space<vmem>>, vector<128x32xf32>
    %c0_7 = arith.constant 0 : index
    %c0_8 = arith.constant 0 : index
    %4 = vector.load %arg3[%c0_7, %c0_8] : memref<32x128xf32, #tpu.memory_space<vmem>>, vector<32x128xf32>
    %cst = arith.constant dense<0.000000e+00> : vector<128x128xf32>
    %5 = tpu.matmul %3, %4, %cst {dimension_numbers = #tpu.dot_dimension_numbers<[1], [0], [0], [1], [0, 0, 1, 1], [], []>} : vector<128x32xf32>, vector<32x128xf32>, vector<128x128xf32> -> vector<128x128xf32>
    %c0_9 = arith.constant 0 : index
    %c0_10 = arith.constant 0 : index
    %6 = vector.load %arg4[%c0_9, %c0_10] : memref<128x128xf32, #tpu.memory_space<vmem>>, vector<128x128xf32>
    tpu.vector_store %arg4[%c0_9, %c0_10], %5 {strides = array<i32>} : memref<128x128xf32, #tpu.memory_space<vmem>>, vector<128x128xf32>,
    return
  }
  func.func @transform_1(%arg0: i32, %arg1: memref<256xi32, #tpu.memory_space<smem>>) -> (i32, i32) {
    %c0_i32 = arith.constant 0 : i32
    %c0_i32_0 = arith.constant 0 : i32
    %c0_i32_1 = arith.constant 0 : i32
    return %c0_i32, %c0_i32_0 : i32, i32
  }
  func.func @transform_2(%arg0: i32, %arg1: memref<256xi32, #tpu.memory_space<smem>>) -> (i32, i32) {
    %c0_i32 = arith.constant 0 : i32
    %c0_i32_0 = arith.constant 0 : i32
    return %arg0, %c0_i32 : i32, i32
  }
}

</mosaic_0001>

<llo_original>
// kernel: tpu_custom_call.1
$region0: #{tpu_custom_call.1}
  #allocation0 [shape = 'u32[]', space=smem, size = 0x4, offset = 0x4, fixed_abs, tag = 'smem constant byte address 0x4 - core index']
  #allocation1 [shape = 'u32[144,128]{1,0:T(1,128)}', space=vmem, size = 0x12000, scoped, tag = 'internal scratch']
  #allocation2 [shape = 'f32[128,32]{1,0:T(8,128)}', space=vmem, size = 0x10000, scoped, tag = 'scratch operand']
  #allocation3 [shape = 's32[1]{0}', space=sflag, size = 0x4, scoped, tag = 'scratch operand']
  #allocation4 [shape = 's32[1]{0}', space=sflag, size = 0x4, scoped, tag = 'scoped memory for tpu_custom_call.1']
  #allocation5 [shape = 'u8[1024]{0}', space=smem, size = 0x400, scoped, tag = 'prefetched SMEM operand 0']
  #allocation8 [shape = 's32[]', space=sflag, size = 0x4, offset = 0, fixed_abs, tag = 'sflag constant byte address 0x0 - dummy sync flag']
  %s0 = inlined_call_operand.vmem [shape: s32[256], index: 0, kind: input, shape index: {}]
  %s1 = inlined_call_operand.vmem [shape: f32[512,32], index: 1, kind: input, shape index: {}]
  %s2 = inlined_call_operand.vmem [shape: f32[32,128], index: 2, kind: input, shape index: {}]
  %s3 = inlined_call_operand.hbm [shape: f32[256,128], index: 3, kind: output, shape index: {}]
  %s4 = sld [smem:[#allocation0]]
  $region81: #{tpu_custom_call.1} parent=0
    _
  %s6 = ssub.s32 1, %s4
  %s7 = scalar_select 0, %s6, %s4
  %s8 = sshll.u32 %s0, 4
  %s9 = int_to_ptr.vmem [resolvable:$true] %s8
  %11 = dma.vmem_to_smem %s9, 32, [#allocation5], [#allocation4]
  %12 = dma.done [#allocation4], 32
  %13 = sfence
  $region1: #{tpu_custom_call.1} parent=0
    #allocation6 [shape = 'u8[131072]{0}', space=vmem, size = 0x20000, scoped, tag = 'output window, operand 0']
    #allocation7 [shape = 's32[2]{0}', space=sflag, size = 0x8, scoped, tag = 'scoped memory for tpu_custom_call.1']
    %14 = vsyncpa [#allocation7], 0
    %s15 = scalar_lea.sflag [#allocation7], 1
    %16 = vsyncpa %s15, 0
    loop: start=0, step=1, limit=4
    $region2: #{tpu_custom_call.1} parent=1 // loop_pre_header
      _
    $region3: #{tpu_custom_call.1} parent=1 // loop_header
      %s18 = sphi 0, %s22
      %p19 = scmp.ge.s32.totalorder %s18, 4
      %s26 = sphi 0, %s26
      %s28 = sphi 0, %s26
      %s29 = sphi 0, %s28
      %s43 = sphi 0, %s29
      %s49 = sphi 0, %s51
      %s52 = sphi 0, %s49
      %s53 = sphi 0, %s52
      %s69 = sphi 0, %s53
    $region4: #{tpu_custom_call.1} parent=1 // loop_header_branch
      %21 = sbr.rel (%p19) target = $region8
    $region5: #{tpu_custom_call.1} parent=1 // loop_body
      %s23 = ssub.s32 %s18, 1
      %s24 = ssub.s32 %s18, 2
      %s25 = sadd.s32 %s18, 1
      %s27 = sadd.s32 %s26, 1
      %p30 = scmp.eq.s32.totalorder %s18, 1
      %p31 = scmp.ne.s32.totalorder %s26, %s28
      %p32 = scmp.eq.s32.totalorder %s18, 0
      %p33 = por %p31, %p32
      %p34 = scmp.ne.s32.totalorder %s26, %s28
      %p35 = scmp.eq.s32.totalorder %s23, 1
      %p36 = por %p34, %p35
      %p37 = scmp.ne.s32.totalorder %s28, %s29
      %p38 = scmp.eq.s32.totalorder %s23, 0
      %p39 = por %p37, %p38
      %p40 = scmp.ne.s32.totalorder %s28, %s29
      %p41 = scmp.eq.s32.totalorder %s24, 1
      %p42 = por %p40, %p41
      %p44 = scmp.ne.s32.totalorder %s29, %s43
      %p45 = scmp.eq.s32.totalorder %s24, 0
      %p46 = por %p44, %p45
      %s47 = ssub.s32 %s18, %s25
      %p48 = scmp.eq.s32.totalorder %s47, 0
      %s50 = sadd.s32 %s49, 1
      %s51 = scalar_select %p48, %s49, %s50
      %p54 = pneg %p48
      %p55 = scmp.eq.s32.totalorder %s18, 1
      %p56 = por %p54, %p55
      %p57 = scmp.ne.s32.totalorder %s49, %s52
      %p58 = scmp.eq.s32.totalorder %s18, 0
      %p59 = por %p57, %p58
      %p60 = scmp.ne.s32.totalorder %s49, %s52
      %p61 = scmp.eq.s32.totalorder %s23, 1
      %p62 = por %p60, %p61
      %p63 = scmp.ne.s32.totalorder %s52, %s53
      %p64 = scmp.eq.s32.totalorder %s23, 0
      %p65 = por %p63, %p64
      %p66 = scmp.ne.s32.totalorder %s52, %s53
      %p67 = scmp.eq.s32.totalorder %s24, 1
      %p68 = por %p66, %p67
      %p70 = scmp.ne.s32.totalorder %s53, %s69
      %p71 = scmp.eq.s32.totalorder %s24, 0
      %p72 = por %p70, %p71
      %p73 = scmp.le.s32.totalorder 1, %s18
      %p74 = scmp.lt.s32.totalorder %s18, 3
      %p75 = pnand %p73, %p74
      %p76 = pneg %p75
      // Predicated region
      $region9: #{tpu_custom_call.1} parent=5 // pred_check
        _
      $region10: #{tpu_custom_call.1} parent=5 // pred_check_branch
        %78 = sbr.rel (%p75) target = $region12
      $region11: #{tpu_custom_call.1} parent=5 // pred_region
        %s79 = ssub.s32 %s18, 1
        // Predicated region
        $region13: #{tpu_custom_call.1} parent=11 // pred_check
          %p80 = pneg %p39
        $region14: #{tpu_custom_call.1} parent=11 // pred_check_branch
          %82 = sbr.rel (%p80) target = $region16
        $region15: #{tpu_custom_call.1} parent=11 // pred_region
          _
        $region16: #{tpu_custom_call.1} parent=11 // pred_fallthru
          _
      $region12: #{tpu_custom_call.1} parent=5 // pred_fallthru
        _
      %p83 = scmp.lt.s32.totalorder %s18, 2
      // Predicated region
      $region17: #{tpu_custom_call.1} parent=5 // pred_check
        %p84 = pneg %p83
      $region18: #{tpu_custom_call.1} parent=5 // pred_check_branch
        %86 = sbr.rel (%p84) target = $region20
      $region19: #{tpu_custom_call.1} parent=5 // pred_region
        _
      $region20: #{tpu_custom_call.1} parent=5 // pred_fallthru
        _
      %p87 = scmp.le.s32.totalorder 1, %s18
      %p88 = scmp.lt.s32.totalorder %s18, 3
      %p89 = pnand %p87, %p88
      %p90 = pneg %p89
      // Predicated region
      $region21: #{tpu_custom_call.1} parent=5 // pred_check
        _
      $region22: #{tpu_custom_call.1} parent=5 // pred_check_branch
        %92 = sbr.rel (%p89) target = $region24
      $region23: #{tpu_custom_call.1} parent=5 // pred_region
        %s93 = ssub.s32 %s18, 1
        %p94 = pneg %p39
        %p95 = pneg %p36
        %p96 = pneg %p65
        %p97 = pneg %p62
        %s98 = sand.u32 %s52, 1
        %s99 = scalar_lea.sflag [#allocation7], %s98
        %s100 = sand.u32 %s52, 1
        %s101 = smul.addr %s100, 128
        %s102 = scalar_lea.vmem [#allocation6], %s101
        %s103 = smul.u32 16, %s23
        %s104 = smul.u32 %s23, 128
        loop: start=0, step=1, limit=128
        $region25: #{tpu_custom_call.1} parent=23 // loop_pre_header
          _
        $region26: #{tpu_custom_call.1} parent=23 // loop_header
          %s106 = sphi 0, %s110
          %p107 = scmp.ge.s32.totalorder %s106, 128
        $region27: #{tpu_custom_call.1} parent=23 // loop_header_branch
          %109 = sbr.rel (%p107) target = $region31
        $region28: #{tpu_custom_call.1} parent=23 // loop_body
          %s111 = sadd.s32 %s104, %s106
          %s112 = sld [smem:[#allocation5 + %s111]]
          %s113 = scalar_lea.vmem %s1, %s112
          %s114 = scalar_lea.vmem [#allocation2], %s106
          %p116 = scmp.lt.u32.totalorder 1, 8
          %p117 = pneg %p116
          // Predicated region
          $region32: #{tpu_custom_call.1} parent=28 // pred_check
            _
          $region33: #{tpu_custom_call.1} parent=28 // pred_check_branch
            %119 = sbr.rel (%p116) target = $region35
          $region34: #{tpu_custom_call.1} parent=28 // pred_region
            %s135 = sand.u32 1, 7
            %p136 = scmp.eq.s32.totalorder %s135, 0
            %p137 = pneg %p136
            // Predicated region
            $region47: #{tpu_custom_call.1} parent=34 // pred_check
              _
            $region48: #{tpu_custom_call.1} parent=34 // pred_check_branch
              %139 = sbr.rel (%p136) target = $region50
            $region49: #{tpu_custom_call.1} parent=34 // pred_region
              %s140 = sand.u32 1, 7
              %s141 = ssub.s32 1, %s140
              %s142 = scalar_lea.vmem %s113, %s141
              %s143 = ssub.s32 1, %s140
              %s144 = scalar_lea.vmem %s114, %s143 [#allocation2]
              %s145 = sshll.u32 1, %s140
              %s146 = ssub.s32 %s145, 1
              loop: start=0, step=1, limit=1
              $region51: #{tpu_custom_call.1} parent=49 // loop_pre_header
                _
              $region52: #{tpu_custom_call.1} parent=49 // loop_header
                %s148 = sphi 0, %s152
                %p149 = scmp.ge.s32.totalorder %s148, 1
                %s153 = sphi %s142, %s142
                %s154 = sphi %s144, %s144
              $region53: #{tpu_custom_call.1} parent=49 // loop_header_branch
                %151 = sbr.rel (%p149) target = $region57
              $region54: #{tpu_custom_call.1} parent=49 // loop_body
                %v155 = vld [vmem:[%s153] sm:%s146]
                %156 = vst [vmem:[%s154] sm:%s146] %v155
              $region55: #{tpu_custom_call.1} parent=49 // loop_footer
                %s152 = sadd.s32 1, %s148
              $region56: #{tpu_custom_call.1} parent=49 // loop_footer_branch
                %147 = sbr.rel target = $region52
              $region57: #{tpu_custom_call.1} parent=49 // loop_exit
                _
            $region50: #{tpu_custom_call.1} parent=34 // pred_fallthru
              _
          $region35: #{tpu_custom_call.1} parent=28 // pred_fallthru
            _
          // Predicated region
          $region36: #{tpu_custom_call.1} parent=28 // pred_check
            %p120 = pneg %p116
          $region37: #{tpu_custom_call.1} parent=28 // pred_check_branch
            %122 = sbr.rel (%p120) target = $region39
          $region38: #{tpu_custom_call.1} parent=28 // pred_region
            %s123 = sshll.u32 1, 1
            %s124 = ssub.s32 %s123, 1
            loop: start=0, step=1, limit=1
            $region40: #{tpu_custom_call.1} parent=38 // loop_pre_header
              _
            $region41: #{tpu_custom_call.1} parent=38 // loop_header
              %s126 = sphi 0, %s130
              %p127 = scmp.ge.s32.totalorder %s126, 1
              %s131 = sphi %s113, %s113
              %s132 = sphi %s114, %s114
            $region42: #{tpu_custom_call.1} parent=38 // loop_header_branch
              %129 = sbr.rel (%p127) target = $region46
            $region43: #{tpu_custom_call.1} parent=38 // loop_body
              %v133 = vld [vmem:[%s131] sm:%s124]
              %134 = vst [vmem:[%s132] sm:%s124] %v133
            $region44: #{tpu_custom_call.1} parent=38 // loop_footer
              %s130 = sadd.s32 1, %s126
            $region45: #{tpu_custom_call.1} parent=38 // loop_footer_branch
              %125 = sbr.rel target = $region41
            $region46: #{tpu_custom_call.1} parent=38 // loop_exit
              _
          $region39: #{tpu_custom_call.1} parent=28 // pred_fallthru
            _
          // Predicated region
          $region58: #{tpu_custom_call.1} parent=28 // pred_check
            _
          $region59: #{tpu_custom_call.1} parent=28 // pred_check_branch
            %159 = sbr.rel (0) target = $region61
          $region60: #{tpu_custom_call.1} parent=28 // pred_region
            %160 = vsyncadd [#allocation3], 16
          $region61: #{tpu_custom_call.1} parent=28 // pred_fallthru
            _
        $region29: #{tpu_custom_call.1} parent=23 // loop_footer
          %s110 = sadd.s32 1, %s106
        $region30: #{tpu_custom_call.1} parent=23 // loop_footer_branch
          %105 = sbr.rel target = $region26
        $region31: #{tpu_custom_call.1} parent=23 // loop_exit
          _
        loop: start=0, step=1, limit=128
        $region62: #{tpu_custom_call.1} parent=23 // loop_pre_header
          _
        $region63: #{tpu_custom_call.1} parent=23 // loop_header
          %s162 = sphi 0, %s166
          %p163 = scmp.ge.s32.totalorder %s162, 128
        $region64: #{tpu_custom_call.1} parent=23 // loop_header_branch
          %165 = sbr.rel (%p163) target = $region68
        $region65: #{tpu_custom_call.1} parent=23 // loop_body
          %s167 = sadd.s32 %s104, %s162
          %s168 = sld [smem:[#allocation5 + %s167]]
          %170 = dma.done [#allocation3], 16
        $region66: #{tpu_custom_call.1} parent=23 // loop_footer
          %s166 = sadd.s32 1, %s162
        $region67: #{tpu_custom_call.1} parent=23 // loop_footer_branch
          %161 = sbr.rel target = $region63
        $region68: #{tpu_custom_call.1} parent=23 // loop_exit
          _
        %v171 = vld [vmem:[#allocation2] sm:$0xff]
        %v172 = vld [vmem:[#allocation2 + $0x8] sm:$0xff]
        %v173 = vld [vmem:[#allocation2 + $0x10] sm:$0xff]
        %v174 = vld [vmem:[#allocation2 + $0x18] sm:$0xff]
        %v175 = vld [vmem:[#allocation2 + $0x20] sm:$0xff]
        %v176 = vld [vmem:[#allocation2 + $0x28] sm:$0xff]
        %v177 = vld [vmem:[#allocation2 + $0x30] sm:$0xff]
        %v178 = vld [vmem:[#allocation2 + $0x38] sm:$0xff]
        %v179 = vld [vmem:[#allocation2 + $0x40] sm:$0xff]
        %v180 = vld [vmem:[#allocation2 + $0x48] sm:$0xff]
        %v181 = vld [vmem:[#allocation2 + $0x50] sm:$0xff]
        %v182 = vld [vmem:[#allocation2 + $0x58] sm:$0xff]
        %v183 = vld [vmem:[#allocation2 + $0x60] sm:$0xff]
        %v184 = vld [vmem:[#allocation2 + $0x68] sm:$0xff]
        %v185 = vld [vmem:[#allocation2 + $0x70] sm:$0xff]
        %v186 = vld [vmem:[#allocation2 + $0x78] sm:$0xff]
        %v187 = vld [vmem:[%s2] sm:$0xff]
        %v188 = vld [vmem:[%s2 + $0x8] sm:$0xff]
        %v189 = vld [vmem:[%s2 + $0x10] sm:$0xff]
        %v190 = vld [vmem:[%s2 + $0x18] sm:$0xff]
        %vm191 = vcmask 261120
        %v193 = vsel %vm191, %v171, 0
        %v196 = vsel %vm191, %v172, 0
        %v199 = vsel %vm191, %v173, 0
        %v202 = vsel %vm191, %v174, 0
        %v205 = vsel %vm191, %v175, 0
        %v208 = vsel %vm191, %v176, 0
        %v211 = vsel %vm191, %v177, 0
        %v214 = vsel %vm191, %v178, 0
        %v217 = vsel %vm191, %v179, 0
        %v220 = vsel %vm191, %v180, 0
        %v223 = vsel %vm191, %v181, 0
        %v226 = vsel %vm191, %v182, 0
        %v229 = vsel %vm191, %v183, 0
        %v232 = vsel %vm191, %v184, 0
        %v235 = vsel %vm191, %v185, 0
        %v238 = vsel %vm191, %v186, 0
        %240 = vmatprep.subr.mxu0 0.0
        %241 = vmatpush1.msra.mxu0 0.0
        %242 = vmatprep.subr.mxu0 0.0
        %243 = vmatpush1.msra.mxu0 0.0
        %244 = vmatprep.subr.mxu0 0.0
        %245 = vmatpush1.msra.mxu0 0.0
        %246 = vmatprep.subr.mxu0 0.0
        %247 = vmatpush1.msra.mxu0 0.0
        %248 = vmatprep.subr.mxu0 0.0
        %249 = vmatpush1.msra.mxu0 0.0
        %250 = vmatprep.subr.mxu0 0.0
        %251 = vmatpush1.msra.mxu0 0.0
        %252 = vmatprep.subr.mxu0 0.0
        %253 = vmatpush1.msra.mxu0 0.0
        %254 = vmatprep.subr.mxu0 0.0
        %255 = vmatpush1.msra.mxu0 0.0
        %256 = vmatprep.subr.mxu0 0.0
        %257 = vmatpush1.msra.mxu0 0.0
        %258 = vmatprep.subr.mxu0 0.0
        %259 = vmatpush1.msra.mxu0 0.0
        %260 = vmatprep.subr.mxu0 0.0
        %261 = vmatpush1.msra.mxu0 0.0
        %262 = vmatprep.subr.mxu0 0.0
        %263 = vmatpush1.msra.mxu0 0.0
        %264 = vmatprep.subr.mxu0 0.0
        %265 = vmatpush1.msra.mxu0 %v190
        %266 = vmatprep.subr.mxu0 0.0
        %267 = vmatpush1.msra.mxu0 %v189
        %268 = vmatprep.subr.mxu0 0.0
        %269 = vmatpush1.msra.mxu0 %v188
        %270 = vmatprep.subr.mxu0 0.0
        %271 = vmatpush1.msra.mxu0 %v187
        %272 = vmatprep.subr.mxu0 0.0
        %273 = vmatpush2.msra.mxu0 0.0
        %274 = vmatprep.subr.mxu0 0.0
        %275 = vmatpush2.msra.mxu0 0.0
        %276 = vmatprep.subr.mxu0 0.0
        %277 = vmatpush2.msra.mxu0 0.0
        %278 = vmatprep.subr.mxu0 0.0
        %279 = vmatpush2.msra.mxu0 0.0
        %280 = vmatprep.subr.mxu0 0.0
        %281 = vmatpush2.msra.mxu0 0.0
        %282 = vmatprep.subr.mxu0 0.0
        %283 = vmatpush2.msra.mxu0 0.0
        %284 = vmatprep.subr.mxu0 0.0
        %285 = vmatpush2.msra.mxu0 0.0
        %286 = vmatprep.subr.mxu0 0.0
        %287 = vmatpush2.msra.mxu0 0.0
        %288 = vmatprep.subr.mxu0 0.0
        %289 = vmatpush2.msra.mxu0 0.0
        %290 = vmatprep.subr.mxu0 0.0
        %291 = vmatpush2.msra.mxu0 0.0
        %292 = vmatprep.subr.mxu0 0.0
        %293 = vmatpush2.msra.mxu0 0.0
        %294 = vmatprep.subr.mxu0 0.0
        %295 = vmatpush2.msra.mxu0 0.0
        %296 = vmatprep.subr.mxu0 0.0
        %297 = vmatpush2.msra.mxu0 0.0
        %298 = vmatprep.subr.mxu0 0.0
        %299 = vmatpush2.msra.mxu0 0.0
        %300 = vmatprep.subr.mxu0 0.0
        %301 = vmatpush2.msra.mxu0 0.0
        %302 = vmatprep.subr.mxu0 0.0
        %303 = vmatpush2.msra.mxu0 0.0
        %304 = vmatprep.mubr.f32.mxu0 0.0
        %305 = vmatmul.mubr.f32.gmra.mxu0 %v193
        %v306 = vpop.f32.mrf.mxu0
        %v307 = vadd.f32 0.0, %v306
        %v308 = vpop.f32.mrf.mxu0
        %309 = vmatprep.mubr.f32.mxu0 0.0
        %310 = vmatmul.mubr.f32.gmra.mxu0 %v196
        %v311 = vpop.f32.mrf.mxu0
        %v312 = vadd.f32 0.0, %v311
        %v313 = vpop.f32.mrf.mxu0
        %314 = vmatprep.mubr.f32.mxu0 0.0
        %315 = vmatmul.mubr.f32.gmra.mxu0 %v199
        %v316 = vpop.f32.mrf.mxu0
        %v317 = vadd.f32 0.0, %v316
        %v318 = vpop.f32.mrf.mxu0
        %319 = vmatprep.mubr.f32.mxu0 0.0
        %320 = vmatmul.mubr.f32.gmra.mxu0 %v202
        %v321 = vpop.f32.mrf.mxu0
        %v322 = vadd.f32 0.0, %v321
        %v323 = vpop.f32.mrf.mxu0
        %324 = vmatprep.mubr.f32.mxu0 0.0
        %325 = vmatmul.mubr.f32.gmra.mxu0 %v205
        %v326 = vpop.f32.mrf.mxu0
        %v327 = vadd.f32 0.0, %v326
        %v328 = vpop.f32.mrf.mxu0
        %329 = vmatprep.mubr.f32.mxu0 0.0
        %330 = vmatmul.mubr.f32.gmra.mxu0 %v208
        %v331 = vpop.f32.mrf.mxu0
        %v332 = vadd.f32 0.0, %v331
        %v333 = vpop.f32.mrf.mxu0
        %334 = vmatprep.mubr.f32.mxu0 0.0
        %335 = vmatmul.mubr.f32.gmra.mxu0 %v211
        %v336 = vpop.f32.mrf.mxu0
        %v337 = vadd.f32 0.0, %v336
        %v338 = vpop.f32.mrf.mxu0
        %339 = vmatprep.mubr.f32.mxu0 0.0
        %340 = vmatmul.mubr.f32.gmra.mxu0 %v214
        %v341 = vpop.f32.mrf.mxu0
        %v342 = vadd.f32 0.0, %v341
        %v343 = vpop.f32.mrf.mxu0
        %344 = vmatprep.mubr.f32.mxu0 0.0
        %345 = vmatmul.mubr.f32.gmra.mxu0 %v217
        %v346 = vpop.f32.mrf.mxu0
        %v347 = vadd.f32 0.0, %v346
        %v348 = vpop.f32.mrf.mxu0
        %349 = vmatprep.mubr.f32.mxu0 0.0
        %350 = vmatmul.mubr.f32.gmra.mxu0 %v220
        %v351 = vpop.f32.mrf.mxu0
        %v352 = vadd.f32 0.0, %v351
        %v353 = vpop.f32.mrf.mxu0
        %354 = vmatprep.mubr.f32.mxu0 0.0
        %355 = vmatmul.mubr.f32.gmra.mxu0 %v223
        %v356 = vpop.f32.mrf.mxu0
        %v357 = vadd.f32 0.0, %v356
        %v358 = vpop.f32.mrf.mxu0
        %359 = vmatprep.mubr.f32.mxu0 0.0
        %360 = vmatmul.mubr.f32.gmra.mxu0 %v226
        %v361 = vpop.f32.mrf.mxu0
        %v362 = vadd.f32 0.0, %v361
        %v363 = vpop.f32.mrf.mxu0
        %364 = vmatprep.mubr.f32.mxu0 0.0
        %365 = vmatmul.mubr.f32.gmra.mxu0 %v229
        %v366 = vpop.f32.mrf.mxu0
        %v367 = vadd.f32 0.0, %v366
        %v368 = vpop.f32.mrf.mxu0
        %369 = vmatprep.mubr.f32.mxu0 0.0
        %370 = vmatmul.mubr.f32.gmra.mxu0 %v232
        %v371 = vpop.f32.mrf.mxu0
        %v372 = vadd.f32 0.0, %v371
        %v373 = vpop.f32.mrf.mxu0
        %374 = vmatprep.mubr.f32.mxu0 0.0
        %375 = vmatmul.mubr.f32.gmra.mxu0 %v235
        %v376 = vpop.f32.mrf.mxu0
        %v377 = vadd.f32 0.0, %v376
        %v378 = vpop.f32.mrf.mxu0
        %379 = vmatprep.mubr.f32.mxu0 0.0
        %380 = vmatmul.mubr.f32.gmra.mxu0 %v238
        %v381 = vpop.f32.mrf.mxu0
        %v382 = vadd.f32 0.0, %v381
        %v383 = vpop.f32.mrf.mxu0
        %384 = vdwg.mxu0
        %385 = vst [vmem:[%s102] sm:$0xff] %v307
        %386 = vst [vmem:[%s102 + $0x8] sm:$0xff] %v312
        %387 = vst [vmem:[%s102 + $0x10] sm:$0xff] %v317
        %388 = vst [vmem:[%s102 + $0x18] sm:$0xff] %v322
        %389 = vst [vmem:[%s102 + $0x20] sm:$0xff] %v327
        %390 = vst [vmem:[%s102 + $0x28] sm:$0xff] %v332
        %391 = vst [vmem:[%s102 + $0x30] sm:$0xff] %v337
        %392 = vst [vmem:[%s102 + $0x38] sm:$0xff] %v342
        %393 = vst [vmem:[%s102 + $0x40] sm:$0xff] %v347
        %394 = vst [vmem:[%s102 + $0x48] sm:$0xff] %v352
        %395 = vst [vmem:[%s102 + $0x50] sm:$0xff] %v357
        %396 = vst [vmem:[%s102 + $0x58] sm:$0xff] %v362
        %397 = vst [vmem:[%s102 + $0x60] sm:$0xff] %v367
        %398 = vst [vmem:[%s102 + $0x68] sm:$0xff] %v372
        %399 = vst [vmem:[%s102 + $0x70] sm:$0xff] %v377
        %400 = vst [vmem:[%s102 + $0x78] sm:$0xff] %v382
        %s401 = sand.u32 %s52, 1
        %s402 = scalar_lea.sflag [#allocation7], %s401
        %s403 = sand.u32 %s52, 1
        %s404 = smul.addr %s403, 128
        %s405 = scalar_lea.vmem [#allocation6], %s404
        // Predicated region
        $region69: #{tpu_custom_call.1} parent=23 // pred_check
          %p406 = pneg %p62
        $region70: #{tpu_custom_call.1} parent=23 // pred_check_branch
          %408 = sbr.rel (%p406) target = $region72
        $region71: #{tpu_custom_call.1} parent=23 // pred_region
          %s409 = smul.u32 16, %s23
          %s411 = ssub.s32 2048, 2048
          %412 = vsyncadd %s402, %s411
          %s413 = smul.addr %s409, 128
          %s414 = scalar_lea.hbm %s3, %s413
          %s415 = sshll.u32 %s405, 4
          %s416 = int_to_ptr.vmem [resolvable:$true] %s415
          %421 = dma.vmem_to_hbm [thread:$0]  %s416, 2048, %s414, %s402, 128, 128, 8
        $region72: #{tpu_custom_call.1} parent=23 // pred_fallthru
          _
      $region24: #{tpu_custom_call.1} parent=5 // pred_fallthru
        _
      %p422 = scmp.le.s32.totalorder 2, %s18
      // Predicated region
      $region73: #{tpu_custom_call.1} parent=5 // pred_check
        %p423 = pneg %p422
      $region74: #{tpu_custom_call.1} parent=5 // pred_check_branch
        %425 = sbr.rel (%p423) target = $region76
      $region75: #{tpu_custom_call.1} parent=5 // pred_region
        %s426 = ssub.s32 %s18, 2
        // Predicated region
        $region77: #{tpu_custom_call.1} parent=75 // pred_check
          %p427 = pneg %p68
        $region78: #{tpu_custom_call.1} parent=75 // pred_check_branch
          %429 = sbr.rel (%p427) target = $region80
        $region79: #{tpu_custom_call.1} parent=75 // pred_region
          %s430 = sand.u32 %s53, 1
          %s431 = scalar_lea.sflag [#allocation7], %s430
          %s432 = sand.u32 %s53, 1
          %s433 = smul.addr %s432, 128
          %s434 = scalar_lea.vmem [#allocation6], %s433
          %435 = dma.done %s431, 2048
        $region80: #{tpu_custom_call.1} parent=75 // pred_fallthru
          _
      $region76: #{tpu_custom_call.1} parent=5 // pred_fallthru
        _
    $region6: #{tpu_custom_call.1} parent=1 // loop_footer
      %s22 = sadd.s32 1, %s18
    $region7: #{tpu_custom_call.1} parent=1 // loop_footer_branch
      %17 = sbr.rel target = $region3
    $region8: #{tpu_custom_call.1} parent=1 // loop_exit
      _
    %436 = vsyncpa [#allocation7], 1
    %s437 = scalar_lea.sflag [#allocation7], 1
    %438 = vsyncpa %s437, 1
  %439 = vsyncmov [#allocation3]
  %s440 = vpop.sfrf %439
  %p441 = scmp.eq.s32.totalorder %s440, 0
  %p442 = pneg %p441
  %444 = shalt.err (%p442)

</llo_original>
